<compile_context>
chip_gen: v5e
topology: v5e:2x2
jax: 0.10.0
libtpu: 0.0.40
codegen_flags: <defaults>
</compile_context>

<pallas_src>
import math

import jax
import jax.numpy as jnp
from jax.experimental import pallas as pl
from jax.experimental.pallas import tpu as pltpu


# ----------------------------- config ---------------------------------------
N_EMBD = 32
NUM_HEADS = 4
HEAD_SIZE = 8
BLOCK_SIZE = 8          # == T in this example
GRANULARITY = 2
MATRIX_TYPE = "staircase"   # 'full' | 'triangular' | 'staircase'
B, T = 2, BLOCK_SIZE


def create_staircase_matrix(rows, cols, granularity):
    """JAX port of the PyTorch helper (lower-triangular + block-diagonal fill)."""
    m = jnp.tril(jnp.ones((rows, cols), jnp.float32))
    diag_length = min(rows, cols)
    for i in range(0, diag_length, granularity):
        m = m.at[i:i + granularity, i:i + granularity].set(1.0)
    return m


# ----------------------------- kernel ----------------------------------------
def _make_kernel(Bn, Tn, C, H, hs):
    HH = H * hs
    Z = H * Bn            # fused (head, batch) einsum batch axis

    def mha_kernel(x_ref, slab_ref, bp_ref, mask_ref, o_ref):
        # x_ref:    (B*T, C)          f32   activations, batch folded into M
        # slab_ref: (C, 2*HH + H*C)   bf16  [Wq*scale | Wk | Wv@Wp folded], per head
        # bp_ref:   (1, C)            f32   output-projection bias
        # mask_ref: (T, T)            f32   additive mask bias (0 / -1e9)
        # o_ref:    (B*T, C)          f32
        x = x_ref[...].astype(jnp.bfloat16)

        # Single fused MXU pass: scaled Q, K and the projection-folded V for
        # every head at once (bf16 operands, f32 accumulation).
        qkv = jnp.dot(x, slab_ref[...],
                      preferred_element_type=jnp.float32)        # (BT, 2HH+HC)

        # Gather heads into ONE leading batch axis z = h*B + b (sublane-axis
        # concat + leading-dim reshapes only; no per-head compute).
        q = jnp.concatenate(
            [qkv[:, h * hs:(h + 1) * hs] for h in range(H)], axis=0
        ).reshape(Z, Tn, hs).astype(jnp.bfloat16)
        k = jnp.concatenate(
            [qkv[:, HH + h * hs:HH + (h + 1) * hs] for h in range(H)], axis=0
        ).reshape(Z, Tn, hs).astype(jnp.bfloat16)
        vp = jnp.concatenate(
            [qkv[:, 2 * HH + h * C:2 * HH + (h + 1) * C] for h in range(H)], axis=0
        ).reshape(Z, Tn, C).astype(jnp.bfloat16)

        # Scores for all (head, batch) pairs in one batched einsum; the
        # 1/sqrt(hs) scale is already folded into Wq.
        s = jnp.einsum("ztd,zsd->zts", q, k,
                       preferred_element_type=jnp.float32)        # (Z, T, T)
        s = s + mask_ref[...][None, :, :]                         # additive mask

        # Manual softmax in f32; the divide becomes an EUP reciprocal.
        m = jnp.max(s, axis=-1, keepdims=True)
        e = jnp.exp(s - m)
        denom = jnp.sum(e, axis=-1, keepdims=True)
        p = (e * pl.reciprocal(denom, approx=True)).astype(jnp.bfloat16)
        # attention dropout -> identity (eval mode)

        # Context already carries the folded output projection; summing the
        # head axis reproduces concat(heads) @ Wproj without any lane concat.
        ctx = jnp.einsum("zts,zsc->ztc", p, vp,
                         preferred_element_type=jnp.float32)      # (Z, T, C)
        out = ctx.reshape(H, Bn, Tn, C).sum(axis=0)               # (B, T, C)
        out = out.reshape(Bn * Tn, C) + bp_ref[...]
        # output dropout -> identity (eval mode)
        # NOTE: C=32 is lane-sparse (<128) so this store is a masked vst;
        # unavoidable with the module's n_embd, negligible at this size.
        o_ref[...] = out.astype(o_ref.dtype)

    return mha_kernel


# ------------------------ one-time parameter packing --------------------------
def pack_mha_params(wq, wk, wv, wp, bp, mask):
    """Host-side packing, done ONCE at init (hoisted out of the per-call path).

    wq/wk/wv: (H, C, hs)   per-head projection weights
    wp:       (H*hs, C)    output projection weight
    bp:       (1, C)       output projection bias
    mask:     (T, T)       0/1 attention mask
    """
    H, C, hs = wq.shape
    HH = H * hs
    scale = 1.0 / math.sqrt(hs)

    wq_flat = (wq * scale).transpose(1, 0, 2).reshape(C, HH)      # scale folded
    wk_flat = wk.transpose(1, 0, 2).reshape(C, HH)
    # Fold the output projection into V per head: Wvp_h = Wv_h @ Wp_h -> (C, C).
    wvp = jnp.concatenate(
        [wv[h] @ wp[h * hs:(h + 1) * hs, :] for h in range(H)], axis=1)  # (C, H*C)

    # Fully dense weight slab, stored bf16 for single-pass MXU matmuls.
    slab = jnp.concatenate([wq_flat, wk_flat, wvp], axis=1).astype(jnp.bfloat16)

    # Additive mask bias: 0 where attended, -1e9 where masked (robust vs -inf).
    mask_bias = jnp.where(mask == 0.0, jnp.float32(-1e9), jnp.float32(0.0))

    bp2d = jnp.asarray(bp, jnp.float32).reshape(1, C)
    return slab, bp2d, mask_bias


# ----------------------------- wrapper ----------------------------------------
def multi_head_attention(x, slab, bp2d, mask_bias,
                         num_heads=NUM_HEADS, head_size=HEAD_SIZE):
    Bn, Tn, C = x.shape
    kernel = _make_kernel(Bn, Tn, C, num_heads, head_size)

    # Whole problem (~50 KB) lives in VMEM in one invocation: no grid.
    # TODO(synk): at production sizes, tile with a grid over batch/tokens
    # ("parallel" dimension_semantics so v7x's 2 TensorCores both work, weight
    # slab index_map returning a constant block so it stays VMEM-resident,
    # vmem_limit_bytes headroom) and lay the output out lane-dense (>=128).
    out2d = pl.pallas_call(
        kernel,
        out_shape=jax.ShapeDtypeStruct((Bn * Tn, C), x.dtype),
        in_specs=[
            pl.BlockSpec(memory_space=pltpu.MemorySpace.VMEM),   # x2d
            pl.BlockSpec(memory_space=pltpu.MemorySpace.VMEM),   # weight slab
            pl.BlockSpec(memory_space=pltpu.MemorySpace.VMEM),   # proj bias
            pl.BlockSpec(memory_space=pltpu.MemorySpace.VMEM),   # mask bias
        ],
        out_specs=pl.BlockSpec(memory_space=pltpu.MemorySpace.VMEM),
    )(x.reshape(Bn * Tn, C), slab, bp2d, mask_bias)
    return out2d.reshape(Bn, Tn, C)


# ----------------------------- reference (plain JAX) --------------------------
def reference(x, wq, wk, wv, mask, wp, bp):
    outs = []
    scale = 1.0 / math.sqrt(HEAD_SIZE)
    for h in range(NUM_HEADS):
        q = x @ wq[h]
        k = x @ wk[h]
        v = x @ wv[h]
        wei = jnp.einsum("btd,bsd->bts", q, k) * scale
        if MATRIX_TYPE != "full":
            wei = jnp.where(mask == 0.0, -jnp.inf, wei)
        wei = jax.nn.softmax(wei, axis=-1)
        outs.append(jnp.einsum("bts,bsd->btd", wei, v))
    cat = jnp.concatenate(outs, axis=-1)
    return cat @ wp + bp


# ----------------------------- main -------------------------------------------
if __name__ == "__main__":
    key = jax.random.PRNGKey(0)
    ks = jax.random.split(key, 6)

    x = jax.random.normal(ks[0], (B, T, N_EMBD), jnp.float32)

    # nn.Linear(n_embd, head_size, bias=False) weight is (head_size, n_embd);
    # initialize per-head in that layout, then transpose to (C, head_size).
    lin_scale = 1.0 / math.sqrt(N_EMBD)
    wq = (jax.random.uniform(ks[1], (NUM_HEADS, HEAD_SIZE, N_EMBD),
                             jnp.float32, -lin_scale, lin_scale)).transpose(0, 2, 1)
    wk = (jax.random.uniform(ks[2], (NUM_HEADS, HEAD_SIZE, N_EMBD),
                             jnp.float32, -lin_scale, lin_scale)).transpose(0, 2, 1)
    wv = (jax.random.uniform(ks[3], (NUM_HEADS, HEAD_SIZE, N_EMBD),
                             jnp.float32, -lin_scale, lin_scale)).transpose(0, 2, 1)

    # nn.Linear(head_size*num_heads, n_embd): weight (n_embd, H*hs), bias (n_embd,)
    proj_in = NUM_HEADS * HEAD_SIZE
    proj_scale = 1.0 / math.sqrt(proj_in)
    wp = jax.random.uniform(ks[4], (N_EMBD, proj_in),
                            jnp.float32, -proj_scale, proj_scale).T      # (H*hs, C)
    bp = jax.random.uniform(ks[5], (1, N_EMBD),
                            jnp.float32, -proj_scale, proj_scale)        # (1, C)

    if MATRIX_TYPE == "triangular":
        mask = jnp.tril(jnp.ones((BLOCK_SIZE, BLOCK_SIZE), jnp.float32))
    elif MATRIX_TYPE == "staircase":
        mask = create_staircase_matrix(BLOCK_SIZE, BLOCK_SIZE, GRANULARITY)
    else:
        mask = jnp.ones((BLOCK_SIZE, BLOCK_SIZE), jnp.float32)
    mask = mask[:T, :T]

    # One-time packing (hoisted out of the per-call path, per perf review).
    slab, bp2d, mask_bias = pack_mha_params(wq, wk, wv, wp, bp, mask)

    out = multi_head_attention(x, slab, bp2d, mask_bias)
    out = jax.block_until_ready(out)

    ref = reference(x, wq, wk, wv, mask, wp, bp)
    assert out.shape == (B, T, N_EMBD)
    # Kernel uses bf16 MXU operands (per perf review) + Wv@Wp fold, so it is
    # compared against the f32 reference with a bf16-sized tolerance; any
    # structural bug (mask, head mapping, scale) would show O(0.1+) errors.
    assert jnp.allclose(out, ref, atol=5e-2, rtol=5e-2), "mismatch vs reference"

    print("KERNEL_OK")
</pallas_src>

<mosaic_0001>
module attributes {stable_mosaic.version = 11 : i64} {
  func.func @mha_kernel(%arg0: memref<16x32xf32, #tpu.memory_space<vmem>>, %arg1: memref<32x192xbf16, #tpu.memory_space<vmem>>, %arg2: memref<1x32xf32, #tpu.memory_space<vmem>>, %arg3: memref<8x8xf32, #tpu.memory_space<vmem>>, %arg4: memref<16x32xf32, #tpu.memory_space<vmem>>) attributes {dimension_semantics = [], scalar_prefetch = 0 : i64, scratch_operands = 0 : i64, tpu.core_type = #tpu.core_type<tc>} {
    %c0 = arith.constant 0 : index
    %c0_0 = arith.constant 0 : index
    %0 = vector.load %arg0[%c0, %c0_0] : memref<16x32xf32, #tpu.memory_space<vmem>>, vector<16x32xf32>
    %1 = arith.truncf %0 : vector<16x32xf32> to vector<16x32xbf16>
    %c0_1 = arith.constant 0 : index
    %c0_2 = arith.constant 0 : index
    %2 = vector.load %arg1[%c0_1, %c0_2] : memref<32x192xbf16, #tpu.memory_space<vmem>>, vector<32x192xbf16>
    %cst = arith.constant dense<0.000000e+00> : vector<16x192xf32>
    %3 = tpu.matmul %1, %2, %cst {dimension_numbers = #tpu.dot_dimension_numbers<[1], [0], [0], [1], [0, 0, 1, 1], [], []>} : vector<16x32xbf16>, vector<32x192xbf16>, vector<16x192xf32> -> vector<16x192xf32>
    %4 = vector.extract_strided_slice %3 {offsets = [0, 0], sizes = [16, 8], strides = [1, 1]} : vector<16x192xf32> to vector<16x8xf32>
    %5 = vector.extract_strided_slice %3 {offsets = [0, 8], sizes = [16, 8], strides = [1, 1]} : vector<16x192xf32> to vector<16x8xf32>
    %6 = vector.extract_strided_slice %3 {offsets = [0, 16], sizes = [16, 8], strides = [1, 1]} : vector<16x192xf32> to vector<16x8xf32>
    %7 = vector.extract_strided_slice %3 {offsets = [0, 24], sizes = [16, 8], strides = [1, 1]} : vector<16x192xf32> to vector<16x8xf32>
    %8 = tpu.concatenate %4, %5, %6, %7 in 0 : vector<16x8xf32>, vector<16x8xf32>, vector<16x8xf32>, vector<16x8xf32> -> vector<64x8xf32>
    %9 = vector.shape_cast %8 : vector<64x8xf32> to vector<8x8x8xf32>
    %10 = arith.truncf %9 : vector<8x8x8xf32> to vector<8x8x8xbf16>
    %11 = vector.extract_strided_slice %3 {offsets = [0, 32], sizes = [16, 8], strides = [1, 1]} : vector<16x192xf32> to vector<16x8xf32>
    %12 = vector.extract_strided_slice %3 {offsets = [0, 40], sizes = [16, 8], strides = [1, 1]} : vector<16x192xf32> to vector<16x8xf32>
    %13 = vector.extract_strided_slice %3 {offsets = [0, 48], sizes = [16, 8], strides = [1, 1]} : vector<16x192xf32> to vector<16x8xf32>
    %14 = vector.extract_strided_slice %3 {offsets = [0, 56], sizes = [16, 8], strides = [1, 1]} : vector<16x192xf32> to vector<16x8xf32>
    %15 = tpu.concatenate %11, %12, %13, %14 in 0 : vector<16x8xf32>, vector<16x8xf32>, vector<16x8xf32>, vector<16x8xf32> -> vector<64x8xf32>
    %16 = vector.shape_cast %15 : vector<64x8xf32> to vector<8x8x8xf32>
    %17 = arith.truncf %16 : vector<8x8x8xf32> to vector<8x8x8xbf16>
    %18 = vector.extract_strided_slice %3 {offsets = [0, 64], sizes = [16, 32], strides = [1, 1]} : vector<16x192xf32> to vector<16x32xf32>
    %19 = vector.extract_strided_slice %3 {offsets = [0, 96], sizes = [16, 32], strides = [1, 1]} : vector<16x192xf32> to vector<16x32xf32>
    %20 = vector.extract_strided_slice %3 {offsets = [0, 128], sizes = [16, 32], strides = [1, 1]} : vector<16x192xf32> to vector<16x32xf32>
    %21 = vector.extract_strided_slice %3 {offsets = [0, 160], sizes = [16, 32], strides = [1, 1]} : vector<16x192xf32> to vector<16x32xf32>
    %22 = tpu.concatenate %18, %19, %20, %21 in 0 : vector<16x32xf32>, vector<16x32xf32>, vector<16x32xf32>, vector<16x32xf32> -> vector<64x32xf32>
    %23 = vector.shape_cast %22 : vector<64x32xf32> to vector<8x8x32xf32>
    %24 = arith.truncf %23 : vector<8x8x32xf32> to vector<8x8x32xbf16>
    "tpu.trace_start"() <{level = 10 : i32, message = "ztd,zsd->zts"}> : () -> ()
    %cst_3 = arith.constant dense<0.000000e+00> : vector<8x8x8xf32>
    %25 = tpu.matmul %10, %17, %cst_3 {dimension_numbers = #tpu.dot_dimension_numbers<[2], [2], [1], [1], [0, 0, 0, 1, 1, 1], [0], [0]>} : vector<8x8x8xbf16>, vector<8x8x8xbf16>, vector<8x8x8xf32> -> vector<8x8x8xf32>
    "tpu.trace_stop"() : () -> ()
    %c0_4 = arith.constant 0 : index
    %c0_5 = arith.constant 0 : index
    %26 = vector.load %arg3[%c0_4, %c0_5] : memref<8x8xf32, #tpu.memory_space<vmem>>, vector<8x8xf32>
    %27 = vector.shape_cast %26 : vector<8x8xf32> to vector<1x8x8xf32>
    %28 = vector.broadcast %27 : vector<1x8x8xf32> to vector<8x8x8xf32>
    %29 = arith.addf %25, %28 : vector<8x8x8xf32>
    %cst_6 = arith.constant dense<0xFF800000> : vector<8x8xf32>
    %30 = vector.multi_reduction <maximumf>, %29, %cst_6 [2] : vector<8x8x8xf32> to vector<8x8xf32>
    %31 = vector.shape_cast %30 : vector<8x8xf32> to vector<8x8x1xf32>
    %32 = vector.broadcast %31 : vector<8x8x1xf32> to vector<8x8x8xf32>
    %33 = arith.subf %29, %32 : vector<8x8x8xf32>
    %34 = math.exp %33 : vector<8x8x8xf32>
    %cst_7 = arith.constant dense<0.000000e+00> : vector<8x8xf32>
    %35 = vector.multi_reduction <add>, %34, %cst_7 [2] : vector<8x8x8xf32> to vector<8x8xf32>
    %36 = vector.shape_cast %35 : vector<8x8xf32> to vector<8x8x1xf32>
    %37 = tpu.reciprocal %36 {approx = true} : vector<8x8x1xf32> -> vector<8x8x1xf32>
    %38 = vector.broadcast %37 : vector<8x8x1xf32> to vector<8x8x8xf32>
    %39 = arith.mulf %34, %38 : vector<8x8x8xf32>
    %40 = arith.truncf %39 : vector<8x8x8xf32> to vector<8x8x8xbf16>
    "tpu.trace_start"() <{level = 10 : i32, message = "zts,zsc->ztc"}> : () -> ()
    %cst_8 = arith.constant dense<0.000000e+00> : vector<8x8x32xf32>
    %41 = tpu.matmul %40, %24, %cst_8 {dimension_numbers = #tpu.dot_dimension_numbers<[2], [1], [1], [2], [0, 0, 0, 1, 1, 2], [0], [0]>} : vector<8x8x8xbf16>, vector<8x8x32xbf16>, vector<8x8x32xf32> -> vector<8x8x32xf32>
    "tpu.trace_stop"() : () -> ()
    %42 = vector.shape_cast %41 : vector<8x8x32xf32> to vector<4x2x8x32xf32>
    %cst_9 = arith.constant dense<0.000000e+00> : vector<2x8x32xf32>
    %43 = vector.multi_reduction <add>, %42, %cst_9 [0] : vector<4x2x8x32xf32> to vector<2x8x32xf32>
    %44 = vector.shape_cast %43 : vector<2x8x32xf32> to vector<16x32xf32>
    %c0_10 = arith.constant 0 : index
    %c0_11 = arith.constant 0 : index
    %45 = vector.load %arg2[%c0_10, %c0_11] : memref<1x32xf32, #tpu.memory_space<vmem>>, vector<1x32xf32>
    %46 = vector.broadcast %45 : vector<1x32xf32> to vector<16x32xf32>
    %47 = arith.addf %44, %46 : vector<16x32xf32>
    %c0_12 = arith.constant 0 : index
    %c0_13 = arith.constant 0 : index
    %48 = vector.load %arg4[%c0_12, %c0_13] : memref<16x32xf32, #tpu.memory_space<vmem>>, vector<16x32xf32>
    tpu.vector_store %arg4[%c0_12, %c0_13], %47 {strides = array<i32>} : memref<16x32xf32, #tpu.memory_space<vmem>>, vector<16x32xf32>,
    return
  }
}

</mosaic_0001>

<llo_original>
// kernel: tpu_custom_call.1
$region0: #{tpu_custom_call.1}
  #allocation0 [shape = 'u32[]', space=smem, size = 0x4, offset = 0x4, fixed_abs, tag = 'smem constant byte address 0x4 - core index']
  #allocation1 [shape = 'u32[72,128]{1,0:T(1,128)}', space=vmem, size = 0x9000, scoped, tag = 'internal scratch']
  %s0 = inlined_call_operand.hbm [shape: f32[16,32], index: 0, kind: input, shape index: {}]
  %s1 = inlined_call_operand.hbm [shape: bf16[32,192], index: 1, kind: input, shape index: {}]
  %s2 = inlined_call_operand.vmem [shape: f32[1,32], index: 2, kind: input, shape index: {}]
  %s3 = inlined_call_operand.hbm [shape: f32[8,8], index: 3, kind: input, shape index: {}]
  %s4 = inlined_call_operand.hbm [shape: f32[16,32], index: 4, kind: output, shape index: {}]
  %s5 = sld [smem:[#allocation0]]
  $region38: #{tpu_custom_call.1} parent=0
    _
  %s7 = ssub.s32 1, %s5
  %s8 = scalar_select 0, %s7, %s5
  $region1: #{tpu_custom_call.1} parent=0
    #allocation2 [shape = 'u8[8192]{0}', space=vmem, size = 0x2000, scoped, tag = 'input window, operand 0, single buffered']
    #allocation3 [shape = 's32[1]{0}', space=sflag, size = 0x4, scoped, tag = 'scoped memory for tpu_custom_call.1']
    #allocation4 [shape = 's32[1]{0}', space=sflag, size = 0x4, scoped, tag = 'scoped memory for tpu_custom_call.1']
    #allocation5 [shape = 'u8[16384]{0}', space=vmem, size = 0x4000, scoped, tag = 'input window, operand 1, single buffered']
    #allocation6 [shape = 's32[1]{0}', space=sflag, size = 0x4, scoped, tag = 'scoped memory for tpu_custom_call.1']
    #allocation7 [shape = 'u8[4096]{0}', space=vmem, size = 0x1000, scoped, tag = 'input window, operand 3, single buffered']
    #allocation8 [shape = 'u8[8192]{0}', space=vmem, size = 0x2000, scoped, tag = 'output window, operand 0, single buffered']
    %9 = vsyncpa [#allocation3], 0
    %10 = vsyncpa [#allocation6], 0
    %11 = vsyncpa [#allocation4], 0
    // Predicated region
    $region2: #{tpu_custom_call.1} parent=1 // pred_check
      _
    $region3: #{tpu_custom_call.1} parent=1 // pred_check_branch
      %13 = sbr.rel (0) target = $region5
    $region4: #{tpu_custom_call.1} parent=1 // pred_region
      %15 = vsyncadd [#allocation3], 0
      %s16 = sshll.u32 %s0, 4
      %s17 = int_to_ptr.hbm [resolvable:$true] %s16
      %s18 = sshll.u32 [#allocation2], 4
      %s19 = int_to_ptr.vmem [resolvable:$true] %s18
      %24 = dma.hbm_to_vmem [thread:$0]  %s17, 256, %s19, [#allocation3], 128, 128, 8
    $region5: #{tpu_custom_call.1} parent=1 // pred_fallthru
      _
    // Predicated region
    $region6: #{tpu_custom_call.1} parent=1 // pred_check
      _
    $region7: #{tpu_custom_call.1} parent=1 // pred_check_branch
      %26 = sbr.rel (0) target = $region9
    $region8: #{tpu_custom_call.1} parent=1 // pred_region
      %28 = vsyncadd [#allocation6], 0
      %s29 = sshll.u32 %s1, 4
      %s30 = int_to_ptr.hbm [resolvable:$true] %s29
      %s31 = sshll.u32 [#allocation5], 4
      %s32 = int_to_ptr.vmem [resolvable:$true] %s31
      %37 = dma.hbm_to_vmem [thread:$0]  %s30, 512, %s32, [#allocation6], 128, 128, 8
    $region9: #{tpu_custom_call.1} parent=1 // pred_fallthru
      _
    // Predicated region
    $region10: #{tpu_custom_call.1} parent=1 // pred_check
      _
    $region11: #{tpu_custom_call.1} parent=1 // pred_check_branch
      %39 = sbr.rel (0) target = $region13
    $region12: #{tpu_custom_call.1} parent=1 // pred_region
      _
    $region13: #{tpu_custom_call.1} parent=1 // pred_fallthru
      _
    // Predicated region
    $region14: #{tpu_custom_call.1} parent=1 // pred_check
      _
    $region15: #{tpu_custom_call.1} parent=1 // pred_check_branch
      %41 = sbr.rel (0) target = $region17
    $region16: #{tpu_custom_call.1} parent=1 // pred_region
      %43 = vsyncadd [#allocation6], 0
      %s45 = sshll.u32 %s3, 4
      %s46 = int_to_ptr.hbm [resolvable:$true] %s45
      %s47 = sshll.u32 [#allocation7], 4
      %s48 = int_to_ptr.vmem [resolvable:$true] %s47
      %50 = dma.hbm_to_vmem [thread:$0]  %s46, 128, %s48, [#allocation6]
    $region17: #{tpu_custom_call.1} parent=1 // pred_fallthru
      _
    // Predicated region
    $region18: #{tpu_custom_call.1} parent=1 // pred_check
      _
    $region19: #{tpu_custom_call.1} parent=1 // pred_check_branch
      %52 = sbr.rel (0) target = $region21
    $region20: #{tpu_custom_call.1} parent=1 // pred_region
      %54 = dma.done [#allocation3], 256
    $region21: #{tpu_custom_call.1} parent=1 // pred_fallthru
      _
    // Predicated region
    $region22: #{tpu_custom_call.1} parent=1 // pred_check
      _
    $region23: #{tpu_custom_call.1} parent=1 // pred_check_branch
      %56 = sbr.rel (0) target = $region25
    $region24: #{tpu_custom_call.1} parent=1 // pred_region
      %58 = dma.done [#allocation6], 512
    $region25: #{tpu_custom_call.1} parent=1 // pred_fallthru
      _
    // Predicated region
    $region26: #{tpu_custom_call.1} parent=1 // pred_check
      _
    $region27: #{tpu_custom_call.1} parent=1 // pred_check_branch
      %60 = sbr.rel (0) target = $region29
    $region28: #{tpu_custom_call.1} parent=1 // pred_region
      %62 = dma.done [#allocation6], 128
    $region29: #{tpu_custom_call.1} parent=1 // pred_fallthru
      _
    %v64 = vld [vmem:[#allocation2] sm:$0xff]
    %v65 = vld [vmem:[#allocation2 + $0x8] sm:$0xff]
    %v66 = vpack.c.bf16 %v65, %v64
    %v67 = vld [vmem:[#allocation5] sm:$0xff]
    %v68 = vld [vmem:[#allocation5 + $0x8] sm:$0xff]
    %v69 = vld [vmem:[#allocation5 + $0x10] sm:$0xff]
    %v70 = vld [vmem:[#allocation5 + $0x18] sm:$0xff]
    %v75 = vunpack.c.l.b16 %v67
    %v76 = vunpack.c.h.b16 %v67
    %v77 = vunpack.c.l.b16 %v68
    %v78 = vunpack.c.h.b16 %v68
    %v79 = vunpack.c.l.b16 %v69
    %v80 = vunpack.c.h.b16 %v69
    %v81 = vunpack.c.l.b16 %v70
    %v82 = vunpack.c.h.b16 %v70
    %v83 = vpack.c.b16 %v77, %v75
    %v84 = vpack.c.b16 %v78, %v76
    %v85 = vpack.c.b16 %v81, %v79
    %v86 = vpack.c.b16 %v82, %v80
    %vm91 = vcmask 261120
    %v93 = vsel %vm91, %v66, 0
    %95 = vmatpush.bf16.msra.mxu0 0
    %96 = vmatpush.bf16.msra.mxu0 0
    %97 = vmatpush.bf16.msra.mxu0 0
    %98 = vmatpush.bf16.msra.mxu0 0
    %99 = vmatpush.bf16.msra.mxu0 0
    %100 = vmatpush.bf16.msra.mxu0 0
    %101 = vmatpush.bf16.msra.mxu0 %v85
    %102 = vmatpush.bf16.msra.mxu0 %v83
    %103 = vmatmul.bf16.gmra.mxu0 %v93
    %v104 = vpop.f32.mrf.mxu0
    %v105 = vadd.f32 0.0, %v104
    %v106 = vpop.f32.mrf.mxu0
    %v107 = vadd.f32 0.0, %v106
    %108 = vdwg.mxu0
    %109 = vmatpush.bf16.msra.mxu0 0
    %110 = vmatpush.bf16.msra.mxu0 0
    %111 = vmatpush.bf16.msra.mxu0 0
    %112 = vmatpush.bf16.msra.mxu0 0
    %113 = vmatpush.bf16.msra.mxu0 0
    %114 = vmatpush.bf16.msra.mxu0 0
    %115 = vmatpush.bf16.msra.mxu0 %v86
    %116 = vmatpush.bf16.msra.mxu0 %v84
    %117 = vmatmul.bf16.gmra.mxu0 %v93
    %v118 = vpop.f32.mrf.mxu0
    %v119 = vadd.f32 0.0, %v118
    %v120 = vpop.f32.mrf.mxu0
    %v121 = vadd.f32 0.0, %v120
    %122 = vdwg.mxu0
    %125 = vrot.lane.b32.xlu0 %v105, 120
    %v126 = vpop.permute.xlu0 %125
    %127 = vrot.lane.b32.xlu0 %v107, 120
    %v128 = vpop.permute.xlu0 %127
    %131 = vrot.lane.b32.xlu0 %v105, 112
    %v132 = vpop.permute.xlu0 %131
    %133 = vrot.lane.b32.xlu0 %v107, 112
    %v134 = vpop.permute.xlu0 %133
    %137 = vrot.lane.b32.xlu0 %v105, 104
    %v138 = vpop.permute.xlu0 %137
    %139 = vrot.lane.b32.xlu0 %v107, 104
    %v140 = vpop.permute.xlu0 %139
    %v143 = vpack.c.bf16 %v105, %v105
    %v144 = vpack.c.bf16 %v107, %v107
    %v145 = vpack.c.bf16 %v126, %v126
    %v146 = vpack.c.bf16 %v128, %v128
    %v147 = vpack.c.bf16 %v132, %v132
    %v148 = vpack.c.bf16 %v134, %v134
    %v149 = vpack.c.bf16 %v138, %v138
    %v150 = vpack.c.bf16 %v140, %v140
    %151 = vrot.lane.b32.xlu0 %v105, 96
    %v152 = vpop.permute.xlu0 %151
    %153 = vrot.lane.b32.xlu0 %v107, 96
    %v154 = vpop.permute.xlu0 %153
    %159 = vrot.lane.b32.xlu0 %v119, 64
    %v160 = vpop.permute.xlu0 %159
    %161 = vrot.lane.b32.xlu0 %v121, 64
    %v162 = vpop.permute.xlu0 %161
    %165 = vrot.lane.b32.xlu0 %v119, 32
    %v166 = vpop.permute.xlu0 %165
    %167 = vrot.lane.b32.xlu0 %v121, 32
    %v168 = vpop.permute.xlu0 %167
    %v171 = vpack.c.bf16 %v152, %v152
    %v172 = vpack.c.bf16 %v154, %v154
    %v173 = vpack.c.bf16 %v160, %v160
    %v174 = vpack.c.bf16 %v162, %v162
    %v175 = vpack.c.bf16 %v166, %v166
    %v176 = vpack.c.bf16 %v168, %v168
    %v177 = vld [vmem:[#allocation7] sm:$0xff]
    %v179 = vunpack.c.l.b16 %v143
    %v180 = vpack.c.b16 %v179, %v179
    %181 = vrot.lane.b32.xlu0 %v180, 96
    %v182 = vpop.permute.xlu0 %181
    %vm183 = vcmask 64512
    %v185 = vsel %vm183, %v143, 0
    %v188 = vsel %vm183, %v182, 0
    %190 = vmatpush.bf16.xpose.msra.mxu0 0
    %191 = vmatpush.bf16.xpose.msra.mxu0 0
    %192 = vmatpush.bf16.xpose.msra.mxu0 0
    %193 = vmatpush.bf16.xpose.msra.mxu0 0
    %194 = vmatpush.bf16.xpose.msra.mxu0 0
    %195 = vmatpush.bf16.xpose.msra.mxu0 0
    %196 = vmatpush.bf16.xpose.msra.mxu0 0
    %197 = vmatpush.bf16.xpose.msra.mxu0 %v188
    %198 = vmatmul.bf16.gmra.mxu0 %v185
    %v199 = vpop.f32.mrf.mxu0
    %v200 = vadd.f32 %v177, %v199
    %v201 = vpop.f32.mrf.mxu0
    %202 = vdwg.mxu0
    %v204 = vunpack.c.l.b16 %v144
    %v205 = vpack.c.b16 %v204, %v204
    %206 = vrot.lane.b32.xlu0 %v205, 96
    %v207 = vpop.permute.xlu0 %206
    %v209 = vsel %vm183, %v144, 0
    %v212 = vsel %vm183, %v207, 0
    %214 = vmatpush.bf16.xpose.msra.mxu0 0
    %215 = vmatpush.bf16.xpose.msra.mxu0 0
    %216 = vmatpush.bf16.xpose.msra.mxu0 0
    %217 = vmatpush.bf16.xpose.msra.mxu0 0
    %218 = vmatpush.bf16.xpose.msra.mxu0 0
    %219 = vmatpush.bf16.xpose.msra.mxu0 0
    %220 = vmatpush.bf16.xpose.msra.mxu0 0
    %221 = vmatpush.bf16.xpose.msra.mxu0 %v212
    %222 = vmatmul.bf16.gmra.mxu0 %v209
    %v223 = vpop.f32.mrf.mxu0
    %v224 = vadd.f32 %v177, %v223
    %v225 = vpop.f32.mrf.mxu0
    %226 = vdwg.mxu0
    %v228 = vunpack.c.l.b16 %v145
    %v229 = vpack.c.b16 %v228, %v228
    %230 = vrot.lane.b32.xlu0 %v229, 96
    %v231 = vpop.permute.xlu0 %230
    %v233 = vsel %vm183, %v145, 0
    %v236 = vsel %vm183, %v231, 0
    %238 = vmatpush.bf16.xpose.msra.mxu0 0
    %239 = vmatpush.bf16.xpose.msra.mxu0 0
    %240 = vmatpush.bf16.xpose.msra.mxu0 0
    %241 = vmatpush.bf16.xpose.msra.mxu0 0
    %242 = vmatpush.bf16.xpose.msra.mxu0 0
    %243 = vmatpush.bf16.xpose.msra.mxu0 0
    %244 = vmatpush.bf16.xpose.msra.mxu0 0
    %245 = vmatpush.bf16.xpose.msra.mxu0 %v236
    %246 = vmatmul.bf16.gmra.mxu0 %v233
    %v247 = vpop.f32.mrf.mxu0
    %v248 = vadd.f32 %v177, %v247
    %v249 = vpop.f32.mrf.mxu0
    %250 = vdwg.mxu0
    %v252 = vunpack.c.l.b16 %v146
    %v253 = vpack.c.b16 %v252, %v252
    %254 = vrot.lane.b32.xlu0 %v253, 96
    %v255 = vpop.permute.xlu0 %254
    %v257 = vsel %vm183, %v146, 0
    %v260 = vsel %vm183, %v255, 0
    %262 = vmatpush.bf16.xpose.msra.mxu0 0
    %263 = vmatpush.bf16.xpose.msra.mxu0 0
    %264 = vmatpush.bf16.xpose.msra.mxu0 0
    %265 = vmatpush.bf16.xpose.msra.mxu0 0
    %266 = vmatpush.bf16.xpose.msra.mxu0 0
    %267 = vmatpush.bf16.xpose.msra.mxu0 0
    %268 = vmatpush.bf16.xpose.msra.mxu0 0
    %269 = vmatpush.bf16.xpose.msra.mxu0 %v260
    %270 = vmatmul.bf16.gmra.mxu0 %v257
    %v271 = vpop.f32.mrf.mxu0
    %v272 = vadd.f32 %v177, %v271
    %v273 = vpop.f32.mrf.mxu0
    %274 = vdwg.mxu0
    %v276 = vunpack.c.l.b16 %v147
    %v277 = vpack.c.b16 %v276, %v276
    %278 = vrot.lane.b32.xlu0 %v277, 96
    %v279 = vpop.permute.xlu0 %278
    %v281 = vsel %vm183, %v147, 0
    %v284 = vsel %vm183, %v279, 0
    %286 = vmatpush.bf16.xpose.msra.mxu0 0
    %287 = vmatpush.bf16.xpose.msra.mxu0 0
    %288 = vmatpush.bf16.xpose.msra.mxu0 0
    %289 = vmatpush.bf16.xpose.msra.mxu0 0
    %290 = vmatpush.bf16.xpose.msra.mxu0 0
    %291 = vmatpush.bf16.xpose.msra.mxu0 0
    %292 = vmatpush.bf16.xpose.msra.mxu0 0
    %293 = vmatpush.bf16.xpose.msra.mxu0 %v284
    %294 = vmatmul.bf16.gmra.mxu0 %v281
    %v295 = vpop.f32.mrf.mxu0
    %v296 = vadd.f32 %v177, %v295
    %v297 = vpop.f32.mrf.mxu0
    %298 = vdwg.mxu0
    %v300 = vunpack.c.l.b16 %v148
    %v301 = vpack.c.b16 %v300, %v300
    %302 = vrot.lane.b32.xlu0 %v301, 96
    %v303 = vpop.permute.xlu0 %302
    %v305 = vsel %vm183, %v148, 0
    %v308 = vsel %vm183, %v303, 0
    %310 = vmatpush.bf16.xpose.msra.mxu0 0
    %311 = vmatpush.bf16.xpose.msra.mxu0 0
    %312 = vmatpush.bf16.xpose.msra.mxu0 0
    %313 = vmatpush.bf16.xpose.msra.mxu0 0
    %314 = vmatpush.bf16.xpose.msra.mxu0 0
    %315 = vmatpush.bf16.xpose.msra.mxu0 0
    %316 = vmatpush.bf16.xpose.msra.mxu0 0
    %317 = vmatpush.bf16.xpose.msra.mxu0 %v308
    %318 = vmatmul.bf16.gmra.mxu0 %v305
    %v319 = vpop.f32.mrf.mxu0
    %v320 = vadd.f32 %v177, %v319
    %v321 = vpop.f32.mrf.mxu0
    %322 = vdwg.mxu0
    %v324 = vunpack.c.l.b16 %v149
    %v325 = vpack.c.b16 %v324, %v324
    %326 = vrot.lane.b32.xlu0 %v325, 96
    %v327 = vpop.permute.xlu0 %326
    %v329 = vsel %vm183, %v149, 0
    %v332 = vsel %vm183, %v327, 0
    %334 = vmatpush.bf16.xpose.msra.mxu0 0
    %335 = vmatpush.bf16.xpose.msra.mxu0 0
    %336 = vmatpush.bf16.xpose.msra.mxu0 0
    %337 = vmatpush.bf16.xpose.msra.mxu0 0
    %338 = vmatpush.bf16.xpose.msra.mxu0 0
    %339 = vmatpush.bf16.xpose.msra.mxu0 0
    %340 = vmatpush.bf16.xpose.msra.mxu0 0
    %341 = vmatpush.bf16.xpose.msra.mxu0 %v332
    %342 = vmatmul.bf16.gmra.mxu0 %v329
    %v343 = vpop.f32.mrf.mxu0
    %v344 = vadd.f32 %v177, %v343
    %v345 = vpop.f32.mrf.mxu0
    %346 = vdwg.mxu0
    %v348 = vunpack.c.l.b16 %v150
    %v349 = vpack.c.b16 %v348, %v348
    %350 = vrot.lane.b32.xlu0 %v349, 96
    %v351 = vpop.permute.xlu0 %350
    %v353 = vsel %vm183, %v150, 0
    %v356 = vsel %vm183, %v351, 0
    %358 = vmatpush.bf16.xpose.msra.mxu0 0
    %359 = vmatpush.bf16.xpose.msra.mxu0 0
    %360 = vmatpush.bf16.xpose.msra.mxu0 0
    %361 = vmatpush.bf16.xpose.msra.mxu0 0
    %362 = vmatpush.bf16.xpose.msra.mxu0 0
    %363 = vmatpush.bf16.xpose.msra.mxu0 0
    %364 = vmatpush.bf16.xpose.msra.mxu0 0
    %365 = vmatpush.bf16.xpose.msra.mxu0 %v356
    %366 = vmatmul.bf16.gmra.mxu0 %v353
    %v367 = vpop.f32.mrf.mxu0
    %v368 = vadd.f32 %v177, %v367
    %v369 = vpop.f32.mrf.mxu0
    %370 = vdwg.mxu0
    %v371 = vsel %vm183, %v200, -inf
    %372 = vmax.xlane.f32.xlu0 %v371
    %v373 = vpop.xlane.xlu0 %372
    %v374 = vsel %vm183, %v224, -inf
    %375 = vmax.xlane.f32.xlu0 %v374
    %v376 = vpop.xlane.xlu0 %375
    %v377 = vsel %vm183, %v248, -inf
    %378 = vmax.xlane.f32.xlu0 %v377
    %v379 = vpop.xlane.xlu0 %378
    %v380 = vsel %vm183, %v272, -inf
    %381 = vmax.xlane.f32.xlu0 %v380
    %v382 = vpop.xlane.xlu0 %381
    %v383 = vsel %vm183, %v296, -inf
    %384 = vmax.xlane.f32.xlu0 %v383
    %v385 = vpop.xlane.xlu0 %384
    %v386 = vsel %vm183, %v320, -inf
    %387 = vmax.xlane.f32.xlu0 %v386
    %v388 = vpop.xlane.xlu0 %387
    %v389 = vsel %vm183, %v344, -inf
    %390 = vmax.xlane.f32.xlu0 %v389
    %v391 = vpop.xlane.xlu0 %390
    %v392 = vsel %vm183, %v368, -inf
    %393 = vmax.xlane.f32.xlu0 %v392
    %v394 = vpop.xlane.xlu0 %393
    %v395 = vsub.f32 %v200, %v373
    %v396 = vsub.f32 %v224, %v376
    %v397 = vsub.f32 %v248, %v379
    %v398 = vsub.f32 %v272, %v382
    %v399 = vsub.f32 %v296, %v385
    %v400 = vsub.f32 %v320, %v388
    %v401 = vsub.f32 %v344, %v391
    %v402 = vsub.f32 %v368, %v394
    %v403 = vmul.f32 %v395, 1.442695
    %v404 = vpow.pop %v403
    %v405 = vmul.f32 %v396, 1.442695
    %v406 = vpow.pop %v405
    %v407 = vmul.f32 %v397, 1.442695
    %v408 = vpow.pop %v407
    %v409 = vmul.f32 %v398, 1.442695
    %v410 = vpow.pop %v409
    %v411 = vmul.f32 %v399, 1.442695
    %v412 = vpow.pop %v411
    %v413 = vmul.f32 %v400, 1.442695
    %v414 = vpow.pop %v413
    %v415 = vmul.f32 %v401, 1.442695
    %v416 = vpow.pop %v415
    %v417 = vmul.f32 %v402, 1.442695
    %v418 = vpow.pop %v417
    %v419 = vsel %vm183, %v404, 0.0
    %420 = vadd.xlane.f32.xlu0 %v419
    %v421 = vpop.xlane.xlu0 %420
    %v422 = vsel %vm183, %v406, 0.0
    %423 = vadd.xlane.f32.xlu0 %v422
    %v424 = vpop.xlane.xlu0 %423
    %v425 = vsel %vm183, %v408, 0.0
    %426 = vadd.xlane.f32.xlu0 %v425
    %v427 = vpop.xlane.xlu0 %426
    %v428 = vsel %vm183, %v410, 0.0
    %429 = vadd.xlane.f32.xlu0 %v428
    %v430 = vpop.xlane.xlu0 %429
    %v431 = vsel %vm183, %v412, 0.0
    %432 = vadd.xlane.f32.xlu0 %v431
    %v433 = vpop.xlane.xlu0 %432
    %v434 = vsel %vm183, %v414, 0.0
    %435 = vadd.xlane.f32.xlu0 %v434
    %v436 = vpop.xlane.xlu0 %435
    %v437 = vsel %vm183, %v416, 0.0
    %438 = vadd.xlane.f32.xlu0 %v437
    %v439 = vpop.xlane.xlu0 %438
    %v440 = vsel %vm183, %v418, 0.0
    %441 = vadd.xlane.f32.xlu0 %v440
    %v442 = vpop.xlane.xlu0 %441
    %v443 = vrcp.pop %v421
    %v444 = vrcp.pop %v424
    %v445 = vrcp.pop %v427
    %v446 = vrcp.pop %v430
    %v447 = vrcp.pop %v433
    %v448 = vrcp.pop %v436
    %v449 = vrcp.pop %v439
    %v450 = vrcp.pop %v442
    %v451 = vmul.f32 %v404, %v443
    %v452 = vmul.f32 %v406, %v444
    %v453 = vmul.f32 %v408, %v445
    %v454 = vmul.f32 %v410, %v446
    %v455 = vmul.f32 %v412, %v447
    %v456 = vmul.f32 %v414, %v448
    %v457 = vmul.f32 %v416, %v449
    %v458 = vmul.f32 %v418, %v450
    %v459 = vpack.c.bf16 %v451, %v451
    %v460 = vpack.c.bf16 %v452, %v452
    %v461 = vpack.c.bf16 %v453, %v453
    %v462 = vpack.c.bf16 %v454, %v454
    %v463 = vpack.c.bf16 %v455, %v455
    %v464 = vpack.c.bf16 %v456, %v456
    %v465 = vpack.c.bf16 %v457, %v457
    %v466 = vpack.c.bf16 %v458, %v458
    %467 = vrot.lane.b32.xlu0 %v180, 64
    %v468 = vpop.permute.xlu0 %467
    %v470 = vsel %vm183, %v459, 0
    %vm472 = vcmask 1043456
    %v474 = vsel %vm472, %v468, 0
    %476 = vmatpush.bf16.msra.mxu0 0
    %477 = vmatpush.bf16.msra.mxu0 0
    %478 = vmatpush.bf16.msra.mxu0 0
    %479 = vmatpush.bf16.msra.mxu0 0
    %480 = vmatpush.bf16.msra.mxu0 0
    %481 = vmatpush.bf16.msra.mxu0 0
    %482 = vmatpush.bf16.msra.mxu0 0
    %483 = vmatpush.bf16.msra.mxu0 %v474
    %484 = vmatmul.bf16.gmra.mxu0 %v470
    %v485 = vpop.f32.mrf.mxu0
    %v486 = vadd.f32 0.0, %v485
    %v487 = vpop.f32.mrf.mxu0
    %488 = vdwg.mxu0
    %489 = vrot.lane.b32.xlu0 %v205, 64
    %v490 = vpop.permute.xlu0 %489
    %v492 = vsel %vm183, %v460, 0
    %v495 = vsel %vm472, %v490, 0
    %497 = vmatpush.bf16.msra.mxu0 0
    %498 = vmatpush.bf16.msra.mxu0 0
    %499 = vmatpush.bf16.msra.mxu0 0
    %500 = vmatpush.bf16.msra.mxu0 0
    %501 = vmatpush.bf16.msra.mxu0 0
    %502 = vmatpush.bf16.msra.mxu0 0
    %503 = vmatpush.bf16.msra.mxu0 0
    %504 = vmatpush.bf16.msra.mxu0 %v495
    %505 = vmatmul.bf16.gmra.mxu0 %v492
    %v506 = vpop.f32.mrf.mxu0
    %v507 = vadd.f32 0.0, %v506
    %v508 = vpop.f32.mrf.mxu0
    %509 = vdwg.mxu0
    %v511 = vunpack.c.l.b16 %v171
    %v512 = vpack.c.b16 %v511, %v511
    %513 = vrot.lane.b32.xlu0 %v512, 64
    %v514 = vpop.permute.xlu0 %513
    %v516 = vsel %vm183, %v461, 0
    %v519 = vsel %vm472, %v514, 0
    %521 = vmatpush.bf16.msra.mxu0 0
    %522 = vmatpush.bf16.msra.mxu0 0
    %523 = vmatpush.bf16.msra.mxu0 0
    %524 = vmatpush.bf16.msra.mxu0 0
    %525 = vmatpush.bf16.msra.mxu0 0
    %526 = vmatpush.bf16.msra.mxu0 0
    %527 = vmatpush.bf16.msra.mxu0 0
    %528 = vmatpush.bf16.msra.mxu0 %v519
    %529 = vmatmul.bf16.gmra.mxu0 %v516
    %v530 = vpop.f32.mrf.mxu0
    %v531 = vadd.f32 0.0, %v530
    %v532 = vpop.f32.mrf.mxu0
    %533 = vdwg.mxu0
    %v535 = vunpack.c.l.b16 %v172
    %v536 = vpack.c.b16 %v535, %v535
    %537 = vrot.lane.b32.xlu0 %v536, 64
    %v538 = vpop.permute.xlu0 %537
    %v540 = vsel %vm183, %v462, 0
    %v543 = vsel %vm472, %v538, 0
    %545 = vmatpush.bf16.msra.mxu0 0
    %546 = vmatpush.bf16.msra.mxu0 0
    %547 = vmatpush.bf16.msra.mxu0 0
    %548 = vmatpush.bf16.msra.mxu0 0
    %549 = vmatpush.bf16.msra.mxu0 0
    %550 = vmatpush.bf16.msra.mxu0 0
    %551 = vmatpush.bf16.msra.mxu0 0
    %552 = vmatpush.bf16.msra.mxu0 %v543
    %553 = vmatmul.bf16.gmra.mxu0 %v540
    %v554 = vpop.f32.mrf.mxu0
    %v555 = vadd.f32 0.0, %v554
    %v556 = vpop.f32.mrf.mxu0
    %557 = vdwg.mxu0
    %v559 = vunpack.c.l.b16 %v173
    %v560 = vpack.c.b16 %v559, %v559
    %561 = vrot.lane.b32.xlu0 %v560, 64
    %v562 = vpop.permute.xlu0 %561
    %v564 = vsel %vm183, %v463, 0
    %v567 = vsel %vm472, %v562, 0
    %569 = vmatpush.bf16.msra.mxu0 0
    %570 = vmatpush.bf16.msra.mxu0 0
    %571 = vmatpush.bf16.msra.mxu0 0
    %572 = vmatpush.bf16.msra.mxu0 0
    %573 = vmatpush.bf16.msra.mxu0 0
    %574 = vmatpush.bf16.msra.mxu0 0
    %575 = vmatpush.bf16.msra.mxu0 0
    %576 = vmatpush.bf16.msra.mxu0 %v567
    %577 = vmatmul.bf16.gmra.mxu0 %v564
    %v578 = vpop.f32.mrf.mxu0
    %v579 = vadd.f32 0.0, %v578
    %v580 = vpop.f32.mrf.mxu0
    %581 = vdwg.mxu0
    %v583 = vunpack.c.l.b16 %v174
    %v584 = vpack.c.b16 %v583, %v583
    %585 = vrot.lane.b32.xlu0 %v584, 64
    %v586 = vpop.permute.xlu0 %585
    %v588 = vsel %vm183, %v464, 0
    %v591 = vsel %vm472, %v586, 0
    %593 = vmatpush.bf16.msra.mxu0 0
    %594 = vmatpush.bf16.msra.mxu0 0
    %595 = vmatpush.bf16.msra.mxu0 0
    %596 = vmatpush.bf16.msra.mxu0 0
    %597 = vmatpush.bf16.msra.mxu0 0
    %598 = vmatpush.bf16.msra.mxu0 0
    %599 = vmatpush.bf16.msra.mxu0 0
    %600 = vmatpush.bf16.msra.mxu0 %v591
    %601 = vmatmul.bf16.gmra.mxu0 %v588
    %v602 = vpop.f32.mrf.mxu0
    %v603 = vadd.f32 0.0, %v602
    %v604 = vpop.f32.mrf.mxu0
    %605 = vdwg.mxu0
    %v607 = vunpack.c.l.b16 %v175
    %v608 = vpack.c.b16 %v607, %v607
    %609 = vrot.lane.b32.xlu0 %v608, 64
    %v610 = vpop.permute.xlu0 %609
    %v612 = vsel %vm183, %v465, 0
    %v615 = vsel %vm472, %v610, 0
    %617 = vmatpush.bf16.msra.mxu0 0
    %618 = vmatpush.bf16.msra.mxu0 0
    %619 = vmatpush.bf16.msra.mxu0 0
    %620 = vmatpush.bf16.msra.mxu0 0
    %621 = vmatpush.bf16.msra.mxu0 0
    %622 = vmatpush.bf16.msra.mxu0 0
    %623 = vmatpush.bf16.msra.mxu0 0
    %624 = vmatpush.bf16.msra.mxu0 %v615
    %625 = vmatmul.bf16.gmra.mxu0 %v612
    %v626 = vpop.f32.mrf.mxu0
    %v627 = vadd.f32 0.0, %v626
    %v628 = vpop.f32.mrf.mxu0
    %629 = vdwg.mxu0
    %v631 = vunpack.c.l.b16 %v176
    %v632 = vpack.c.b16 %v631, %v631
    %633 = vrot.lane.b32.xlu0 %v632, 64
    %v634 = vpop.permute.xlu0 %633
    %v636 = vsel %vm183, %v466, 0
    %v639 = vsel %vm472, %v634, 0
    %641 = vmatpush.bf16.msra.mxu0 0
    %642 = vmatpush.bf16.msra.mxu0 0
    %643 = vmatpush.bf16.msra.mxu0 0
    %644 = vmatpush.bf16.msra.mxu0 0
    %645 = vmatpush.bf16.msra.mxu0 0
    %646 = vmatpush.bf16.msra.mxu0 0
    %647 = vmatpush.bf16.msra.mxu0 0
    %648 = vmatpush.bf16.msra.mxu0 %v639
    %649 = vmatmul.bf16.gmra.mxu0 %v636
    %v650 = vpop.f32.mrf.mxu0
    %v651 = vadd.f32 0.0, %v650
    %v652 = vpop.f32.mrf.mxu0
    %653 = vdwg.mxu0
    %v654 = vsel %vm91, %v486, 0.0
    %v655 = vsel %vm91, %v531, 0.0
    %v656 = vadd.f32 %v654, %v655
    %v657 = vsel %vm91, %v579, 0.0
    %v658 = vadd.f32 %v656, %v657
    %v659 = vsel %vm91, %v627, 0.0
    %v660 = vadd.f32 %v658, %v659
    %v661 = vsel %vm91, %v507, 0.0
    %v662 = vsel %vm91, %v555, 0.0
    %v663 = vadd.f32 %v661, %v662
    %v664 = vsel %vm91, %v603, 0.0
    %v665 = vadd.f32 %v663, %v664
    %v666 = vsel %vm91, %v651, 0.0
    %v667 = vadd.f32 %v665, %v666
    %v668 = vld [vmem:[%s2] sm:$0x1]
    %v670 = vperm.slane %v668, 0
    %v672 = vadd.f32 %v660, %v670
    %v673 = vadd.f32 %v667, %v670
    %674 = vst.msk [vmem:[#allocation8] sm:$0xff] %vm91, %v672
    %675 = vst.msk [vmem:[#allocation8 + $0x8] sm:$0xff] %vm91, %v673
    // Predicated region
    $region30: #{tpu_custom_call.1} parent=1 // pred_check
      _
    $region31: #{tpu_custom_call.1} parent=1 // pred_check_branch
      %677 = sbr.rel (0) target = $region33
    $region32: #{tpu_custom_call.1} parent=1 // pred_region
      %679 = vsyncadd [#allocation4], 0
      %s680 = sshll.u32 [#allocation8], 4
      %s681 = int_to_ptr.vmem [resolvable:$true] %s680
      %s682 = sshll.u32 %s4, 4
      %s683 = int_to_ptr.hbm [resolvable:$true] %s682
      %688 = dma.vmem_to_hbm [thread:$0]  %s681, 256, %s683, [#allocation4], 128, 128, 8
    $region33: #{tpu_custom_call.1} parent=1 // pred_fallthru
      _
    // Predicated region
    $region34: #{tpu_custom_call.1} parent=1 // pred_check
      _
    $region35: #{tpu_custom_call.1} parent=1 // pred_check_branch
      %690 = sbr.rel (0) target = $region37
    $region36: #{tpu_custom_call.1} parent=1 // pred_region
      %692 = dma.done [#allocation4], 256
    $region37: #{tpu_custom_call.1} parent=1 // pred_fallthru
      _
    %693 = vsyncpa [#allocation3], 1
    %694 = vsyncpa [#allocation6], 1
    %695 = vsyncpa [#allocation4], 1

</llo_original>
